<compile_context>
chip_gen: v6e
topology: v6e:2x2x1
jax: 0.10.0
libtpu: 0.0.40
codegen_flags: <defaults>
</compile_context>

<pallas_src>
import functools
from itertools import combinations

import numpy as np
import jax
import jax.numpy as jnp
from jax import lax
from jax.experimental import pallas as pl
from jax.experimental.pallas import tpu as pltpu


def _triplet_loss_kernel(trip_ref, emb_ref, loss_ref,
                         a_buf, p_buf, n_buf, acc_ref,
                         *, margin, num_triplets, tile_t):
    """One grid step processes `tile_t` triplets.

    trip_ref : SMEM (3 * T_pad,) int32   flattened (T_pad, 3) triplet indices
    emb_ref  : VMEM (N, D_pad)           full embeddings block (resident)
    loss_ref : VMEM (1, 1) f32           mean loss (written on last step)
    a/p/n_buf: VMEM (tile_t, D_pad) f32  gathered rows
    acc_ref  : VMEM (1, 1) f32           running sum of losses
    """
    pid = pl.program_id(0)

    @pl.when(pid == 0)
    def _():
        acc_ref[...] = jnp.zeros_like(acc_ref)

    base = pid * tile_t

    # Gather anchor / positive / negative rows for this tile of triplets.
    # Padded (invalid) triplets point at row 0 -> safe gather, masked below.
    @pl.loop(0, tile_t)
    def _(i):
        t = base + i
        a = trip_ref[3 * t]
        p = trip_ref[3 * t + 1]
        n = trip_ref[3 * t + 2]
        a_buf[pl.ds(i, 1), :] = emb_ref[pl.ds(a, 1), :].astype(a_buf.dtype)
        p_buf[pl.ds(i, 1), :] = emb_ref[pl.ds(p, 1), :].astype(p_buf.dtype)
        n_buf[pl.ds(i, 1), :] = emb_ref[pl.ds(n, 1), :].astype(n_buf.dtype)

    ea = a_buf[...]
    ep = p_buf[...]
    en = n_buf[...]

    d_ap = jnp.sum((ea - ep) ** 2, axis=1, keepdims=True)   # (tile_t, 1)
    d_an = jnp.sum((ea - en) ** 2, axis=1, keepdims=True)   # (tile_t, 1)
    losses = jnp.maximum(d_ap - d_an + margin, 0.0)          # (tile_t, 1)

    # Mask out the padded tail triplets of the last tile.
    t_ids = base + lax.broadcasted_iota(jnp.int32, (tile_t, 1), 0)
    losses = jnp.where(t_ids < num_triplets, losses, 0.0)

    acc_ref[...] = acc_ref[...] + jnp.sum(losses)

    @pl.when(pid == pl.num_programs(0) - 1)
    def _():
        # Global 1/T scale, applied once, in f32.
        loss_ref[...] = (acc_ref[...] * (1.0 / num_triplets)).astype(loss_ref.dtype)


def online_triplet_loss(embeddings: jax.Array,
                        triplets: jax.Array,
                        margin: float):
    """Pallas forward of OnlineTripletLoss given precomputed triplets.

    embeddings: (N, D) float
    triplets:   (T, 3) int   rows of (anchor, positive, negative) indices
    returns:    (mean_loss scalar, T)
    """
    assert embeddings.ndim == 2 and triplets.ndim == 2 and triplets.shape[1] == 3
    N, D = embeddings.shape
    T = int(triplets.shape[0])
    assert T > 0, "need at least one triplet"

    # Lane-dense feature dim (zero padding leaves squared distances unchanged).
    D_pad = ((D + 127) // 128) * 128
    emb = embeddings
    if D_pad != D:
        emb = jnp.pad(emb, ((0, 0), (0, D_pad - D)))

    # Tile the triplet (reduction) axis.
    TILE_T = min(128, ((T + 7) // 8) * 8)
    num_tiles = -(-T // TILE_T)
    T_pad = num_tiles * TILE_T

    trip_flat = jnp.zeros((3 * T_pad,), jnp.int32)
    trip_flat = trip_flat.at[: 3 * T].set(triplets.reshape(-1).astype(jnp.int32))

    kernel = functools.partial(
        _triplet_loss_kernel,
        margin=float(margin),
        num_triplets=T,
        tile_t=TILE_T,
    )

    loss = pl.pallas_call(
        kernel,
        out_shape=jax.ShapeDtypeStruct((1, 1), jnp.float32),
        grid_spec=pltpu.PrefetchScalarGridSpec(
            num_scalar_prefetch=1,              # triplet indices -> SMEM
            grid=(num_tiles,),
            in_specs=[
                # Full embeddings block, resident across the whole grid.
                pl.BlockSpec((N, D_pad), lambda i, trip: (0, 0)),
            ],
            out_specs=pl.BlockSpec((1, 1), lambda i, trip: (0, 0)),
            scratch_shapes=[
                pltpu.VMEM((TILE_T, D_pad), jnp.float32),   # anchors
                pltpu.VMEM((TILE_T, D_pad), jnp.float32),   # positives
                pltpu.VMEM((TILE_T, D_pad), jnp.float32),   # negatives
                pltpu.VMEM((1, 1), jnp.float32),            # loss-sum accumulator
            ],
        ),
        compiler_params=pltpu.CompilerParams(
            dimension_semantics=("arbitrary",),             # reduction axis
        ),
    )(trip_flat, emb)

    return loss[0, 0], T


def get_all_triplets(labels: np.ndarray) -> np.ndarray:
    """Host-side equivalent of AllTripletSelector.get_triplets (deterministic)."""
    labels = np.asarray(labels)
    triplets = []
    for label in sorted(set(labels.tolist())):
        label_mask = labels == label
        label_indices = np.where(label_mask)[0]
        if len(label_indices) < 2:
            continue
        negative_indices = np.where(np.logical_not(label_mask))[0]
        for a, p in combinations(label_indices, 2):
            for n in negative_indices:
                triplets.append([a, p, n])
    return np.asarray(triplets, dtype=np.int32)


if __name__ == "__main__":
    key = jax.random.PRNGKey(0)

    # Small, deterministic example: 16 embeddings of dim 32, 4 classes x 4.
    N, D = 16, 32
    margin = 1.0
    embeddings = jax.random.normal(key, (N, D), dtype=jnp.float32)
    target = np.repeat(np.arange(4), 4)                   # [0,0,0,0,1,1,1,1,...]

    triplets_np = get_all_triplets(target)                # (288, 3)
    triplets = jnp.asarray(triplets_np, dtype=jnp.int32)

    loss, n_triplets = online_triplet_loss(embeddings, triplets, margin)
    loss = jax.block_until_ready(loss)

    # Pure-JAX reference (same math as the PyTorch forward).
    a = embeddings[triplets[:, 0]]
    p = embeddings[triplets[:, 1]]
    n = embeddings[triplets[:, 2]]
    ap = jnp.sum((a - p) ** 2, axis=1)
    an = jnp.sum((a - n) ** 2, axis=1)
    ref = jnp.mean(jnp.maximum(ap - an + margin, 0.0))

    assert n_triplets == triplets_np.shape[0]
    assert jnp.allclose(loss, ref, atol=1e-4, rtol=1e-5), (loss, ref)

    print("KERNEL_OK")
</pallas_src>

<mosaic_0001>
module attributes {stable_mosaic.version = 11 : i64} {
  func.func @_triplet_loss_kernel(%arg0: i32, %arg1: memref<1152xi32, #tpu.memory_space<smem>>, %arg2: memref<16x128xf32, #tpu.memory_space<vmem>>, %arg3: memref<1x1xf32, #tpu.memory_space<vmem>>, %arg4: memref<128x128xf32, #tpu.memory_space<vmem>>, %arg5: memref<128x128xf32, #tpu.memory_space<vmem>>, %arg6: memref<128x128xf32, #tpu.memory_space<vmem>>, %arg7: memref<1x1xf32, #tpu.memory_space<vmem>>) attributes {dimension_semantics = [#tpu.dimension_semantics<arbitrary>], iteration_bounds = array<i64: 3>, scalar_prefetch = 1 : i64, scratch_operands = 4 : i64, tpu.core_type = #tpu.core_type<tc>, window_params = [{pipeline_mode = #tpu.pipeline_mode<synchronous>, transform_indices = @transform_0, window_bounds = array<i64: 16, 128>}, {pipeline_mode = #tpu.pipeline_mode<synchronous>, transform_indices = @transform_1, window_bounds = array<i64: 1, 1>}]} {
    %c0_i32 = arith.constant 0 : i32
    %0 = arith.cmpi eq, %arg0, %c0_i32 : i32
    %1 = arith.extui %0 : i1 to i32
    %c0_i32_0 = arith.constant 0 : i32
    %2 = arith.cmpi ne, %1, %c0_i32_0 : i32
    scf.if %2 {
      %cst_19 = arith.constant 0.000000e+00 : f32
      %39 = vector.broadcast %cst_19 : f32 to vector<1x1xf32>
      %c0_20 = arith.constant 0 : index
      %c0_21 = arith.constant 0 : index
      %40 = vector.load %arg7[%c0_20, %c0_21] : memref<1x1xf32, #tpu.memory_space<vmem>>, vector<1x1xf32>
      tpu.vector_store %arg7[%c0_20, %c0_21], %39 {strides = array<i32>} : memref<1x1xf32, #tpu.memory_space<vmem>>, vector<1x1xf32>,
    } else {
    }
    %c128_i32 = arith.constant 128 : i32
    %3 = arith.muli %arg0, %c128_i32 : i32
    %c0_i32_1 = arith.constant 0 : i32
    %c128_i32_2 = arith.constant 128 : i32
    %4 = arith.addi %c0_i32_1, %c128_i32_2 : i32
    %c1_i32 = arith.constant 1 : i32
    scf.for %arg8 = %c0_i32_1 to %4 step %c1_i32  : i32 {
      %c1_i32_19 = arith.constant 1 : i32
      %39 = arith.muli %arg8, %c1_i32_19 : i32
      %c0_i32_20 = arith.constant 0 : i32
      %40 = arith.addi %c0_i32_20, %39 : i32
      %41 = arith.addi %3, %40 : i32
      %c3_i32 = arith.constant 3 : i32
      %42 = arith.muli %c3_i32, %41 : i32
      %43 = arith.index_cast %42 : i32 to index
      %44 = memref.load %arg1[%43] : memref<1152xi32, #tpu.memory_space<smem>>
      %c3_i32_21 = arith.constant 3 : i32
      %45 = arith.muli %c3_i32_21, %41 : i32
      %c1_i32_22 = arith.constant 1 : i32
      %46 = arith.addi %45, %c1_i32_22 : i32
      %47 = arith.index_cast %46 : i32 to index
      %48 = memref.load %arg1[%47] : memref<1152xi32, #tpu.memory_space<smem>>
      %c3_i32_23 = arith.constant 3 : i32
      %49 = arith.muli %c3_i32_23, %41 : i32
      %c2_i32_24 = arith.constant 2 : i32
      %50 = arith.addi %49, %c2_i32_24 : i32
      %51 = arith.index_cast %50 : i32 to index
      %52 = memref.load %arg1[%51] : memref<1152xi32, #tpu.memory_space<smem>>
      %53 = arith.index_cast %44 : i32 to index
      %c0_25 = arith.constant 0 : index
      %54 = vector.load %arg2[%53, %c0_25] : memref<16x128xf32, #tpu.memory_space<vmem>>, vector<1x128xf32>
      %55 = arith.index_cast %40 : i32 to index
      %c0_26 = arith.constant 0 : index
      %56 = vector.load %arg4[%55, %c0_26] : memref<128x128xf32, #tpu.memory_space<vmem>>, vector<1x128xf32>
      tpu.vector_store %arg4[%55, %c0_26], %54 {strides = array<i32>} : memref<128x128xf32, #tpu.memory_space<vmem>>, vector<1x128xf32>,
      %57 = arith.index_cast %48 : i32 to index
      %c0_27 = arith.constant 0 : index
      %58 = vector.load %arg2[%57, %c0_27] : memref<16x128xf32, #tpu.memory_space<vmem>>, vector<1x128xf32>
      %59 = arith.index_cast %40 : i32 to index
      %c0_28 = arith.constant 0 : index
      %60 = vector.load %arg5[%59, %c0_28] : memref<128x128xf32, #tpu.memory_space<vmem>>, vector<1x128xf32>
      tpu.vector_store %arg5[%59, %c0_28], %58 {strides = array<i32>} : memref<128x128xf32, #tpu.memory_space<vmem>>, vector<1x128xf32>,
      %61 = arith.index_cast %52 : i32 to index
      %c0_29 = arith.constant 0 : index
      %62 = vector.load %arg2[%61, %c0_29] : memref<16x128xf32, #tpu.memory_space<vmem>>, vector<1x128xf32>
      %63 = arith.index_cast %40 : i32 to index
      %c0_30 = arith.constant 0 : index
      %64 = vector.load %arg6[%63, %c0_30] : memref<128x128xf32, #tpu.memory_space<vmem>>, vector<1x128xf32>
      tpu.vector_store %arg6[%63, %c0_30], %62 {strides = array<i32>} : memref<128x128xf32, #tpu.memory_space<vmem>>, vector<1x128xf32>,
    }
    %c128_i32_3 = arith.constant 128 : i32
    %c0 = arith.constant 0 : index
    %c0_4 = arith.constant 0 : index
    %5 = vector.load %arg4[%c0, %c0_4] : memref<128x128xf32, #tpu.memory_space<vmem>>, vector<128x128xf32>
    %c0_5 = arith.constant 0 : index
    %c0_6 = arith.constant 0 : index
    %6 = vector.load %arg5[%c0_5, %c0_6] : memref<128x128xf32, #tpu.memory_space<vmem>>, vector<128x128xf32>
    %c0_7 = arith.constant 0 : index
    %c0_8 = arith.constant 0 : index
    %7 = vector.load %arg6[%c0_7, %c0_8] : memref<128x128xf32, #tpu.memory_space<vmem>>, vector<128x128xf32>
    %8 = arith.subf %5, %6 : vector<128x128xf32>
    %9 = arith.mulf %8, %8 : vector<128x128xf32>
    %cst = arith.constant dense<0.000000e+00> : vector<128xf32>
    %10 = vector.multi_reduction <add>, %9, %cst [1] : vector<128x128xf32> to vector<128xf32>
    %11 = vector.shape_cast %10 : vector<128xf32> to vector<128x1xf32>
    %12 = arith.subf %5, %7 : vector<128x128xf32>
    %13 = arith.mulf %12, %12 : vector<128x128xf32>
    %cst_9 = arith.constant dense<0.000000e+00> : vector<128xf32>
    %14 = vector.multi_reduction <add>, %13, %cst_9 [1] : vector<128x128xf32> to vector<128xf32>
    %15 = vector.shape_cast %14 : vector<128xf32> to vector<128x1xf32>
    %16 = arith.subf %11, %15 : vector<128x1xf32>
    %cst_10 = arith.constant 1.000000e+00 : f32
    %17 = vector.broadcast %cst_10 : f32 to vector<128x1xf32>
    %18 = arith.addf %16, %17 : vector<128x1xf32>
    %cst_11 = arith.constant 0.000000e+00 : f32
    %19 = vector.broadcast %cst_11 : f32 to vector<128x1xf32>
    %20 = arith.maximumf %18, %19 : vector<128x1xf32>
    %21 = tpu.iota {dimensions = array<i32: 0>} : vector<128x1xi32>
    %22 = vector.broadcast %3 : i32 to vector<128x1xi32>
    %23 = arith.addi %22, %21 : vector<128x1xi32>
    %c288_i32 = arith.constant 288 : i32
    %24 = vector.broadcast %c288_i32 : i32 to vector<128x1xi32>
    %25 = arith.cmpi slt, %23, %24 : vector<128x1xi32>
    %cst_12 = arith.constant 0.000000e+00 : f32
    %26 = vector.broadcast %cst_12 : f32 to vector<128x1xf32>
    %27 = arith.select %25, %20, %26 : vector<128x1xi1>, vector<128x1xf32>
    %c0_13 = arith.constant 0 : index
    %c0_14 = arith.constant 0 : index
    %28 = vector.load %arg7[%c0_13, %c0_14] : memref<1x1xf32, #tpu.memory_space<vmem>>, vector<1x1xf32>
    %29 = vector.shape_cast %27 : vector<128x1xf32> to vector<1x128x1xf32>
    %cst_15 = arith.constant dense<0.000000e+00> : vector<1xf32>
    %30 = vector.multi_reduction <add>, %29, %cst_15 [1, 2] : vector<1x128x1xf32> to vector<1xf32>
    %31 = vector.shape_cast %30 : vector<1xf32> to vector<1x1x1xf32>
    %32 = vector.extract %31[0, 0, 0] : f32 from vector<1x1x1xf32>
    %33 = vector.broadcast %32 : f32 to vector<1x1xf32>
    %34 = arith.addf %28, %33 : vector<1x1xf32>
    %c0_16 = arith.constant 0 : index
    %c0_17 = arith.constant 0 : index
    %35 = vector.load %arg7[%c0_16, %c0_17] : memref<1x1xf32, #tpu.memory_space<vmem>>, vector<1x1xf32>
    tpu.vector_store %arg7[%c0_16, %c0_17], %34 {strides = array<i32>} : memref<1x1xf32, #tpu.memory_space<vmem>>, vector<1x1xf32>,
    %c2_i32 = arith.constant 2 : i32
    %36 = arith.cmpi eq, %arg0, %c2_i32 : i32
    %37 = arith.extui %36 : i1 to i32
    %c0_i32_18 = arith.constant 0 : i32
    %38 = arith.cmpi ne, %37, %c0_i32_18 : i32
    scf.if %38 {
      %c0_19 = arith.constant 0 : index
      %c0_20 = arith.constant 0 : index
      %39 = vector.load %arg7[%c0_19, %c0_20] : memref<1x1xf32, #tpu.memory_space<vmem>>, vector<1x1xf32>
      %cst_21 = arith.constant 0.00347222225 : f32
      %40 = vector.broadcast %cst_21 : f32 to vector<1x1xf32>
      %41 = arith.mulf %39, %40 : vector<1x1xf32>
      %c0_22 = arith.constant 0 : index
      %c0_23 = arith.constant 0 : index
      %42 = vector.load %arg3[%c0_22, %c0_23] : memref<1x1xf32, #tpu.memory_space<vmem>>, vector<1x1xf32>
      tpu.vector_store %arg3[%c0_22, %c0_23], %41 {strides = array<i32>} : memref<1x1xf32, #tpu.memory_space<vmem>>, vector<1x1xf32>,
    } else {
    }
    return
  }
  func.func @transform_0(%arg0: i32, %arg1: memref<1152xi32, #tpu.memory_space<smem>>) -> (i32, i32) {
    %c0_i32 = arith.constant 0 : i32
    %c0_i32_0 = arith.constant 0 : i32
    %c0_i32_1 = arith.constant 0 : i32
    return %c0_i32, %c0_i32_0 : i32, i32
  }
  func.func @transform_1(%arg0: i32, %arg1: memref<1152xi32, #tpu.memory_space<smem>>) -> (i32, i32) {
    %c0_i32 = arith.constant 0 : i32
    %c0_i32_0 = arith.constant 0 : i32
    %c0_i32_1 = arith.constant 0 : i32
    return %c0_i32, %c0_i32_0 : i32, i32
  }
}

</mosaic_0001>

<llo_original>
// kernel: tpu_custom_call.1
$region0: #{tpu_custom_call.1}
  #allocation0 [shape = 'u32[]', space=smem, size = 0x4, offset = 0x4, fixed_abs, tag = 'smem constant byte address 0x4 - core index']
  #allocation1 [shape = 'u32[144,128]{1,0:T(1,128)}', space=vmem, size = 0x12000, scoped, tag = 'internal scratch']
  #allocation2 [shape = 'f32[128,128]{1,0:T(8,128)}', space=vmem, size = 0x10000, scoped, tag = 'scratch operand']
  #allocation3 [shape = 'f32[128,128]{1,0:T(8,128)}', space=vmem, size = 0x10000, scoped, tag = 'scratch operand']
  #allocation4 [shape = 'f32[128,128]{1,0:T(8,128)}', space=vmem, size = 0x10000, scoped, tag = 'scratch operand']
  #allocation5 [shape = 'f32[1,1]{1,0:T(1,128)}', space=vmem, size = 0x200, scoped, tag = 'scratch operand']
  #allocation6 [shape = 's32[1]{0}', space=sflag, size = 0x4, scoped, tag = 'scoped memory for tpu_custom_call.1']
  #allocation7 [shape = 'u8[4608]{0}', space=smem, size = 0x1200, scoped, tag = 'prefetched SMEM operand 0']
  %s0 = inlined_call_operand.hbm [shape: s32[1152], index: 0, kind: input, shape index: {}]
  %s1 = inlined_call_operand.hbm [shape: f32[16,128], index: 1, kind: input, shape index: {}]
  %s2 = inlined_call_operand.hbm [shape: f32[1,1], index: 2, kind: output, shape index: {}]
  %s3 = sld [smem:[#allocation0]]
  $region56: #{tpu_custom_call.1} parent=0
    _
  %s5 = ssub.s32 1, %s3
  %s6 = scalar_select 0, %s5, %s3
  %8 = dma.hbm_to_smem %s0, 144, [#allocation7], [#allocation6]
  %9 = dma.done [#allocation6], 144
  %10 = sfence
  $region1: #{tpu_custom_call.1} parent=0
    #allocation8 [shape = 'u8[8192]{0}', space=vmem, size = 0x2000, scoped, tag = 'input window, operand 1, single buffered']
    #allocation9 [shape = 's32[2]{0}', space=sflag, size = 0x8, scoped, tag = 'scoped memory for tpu_custom_call.1']
    #allocation10 [shape = 's32[2]{0}', space=sflag, size = 0x8, scoped, tag = 'scoped memory for tpu_custom_call.1']
    #allocation11 [shape = 'u8[512]{0}', space=vmem, size = 0x400, scoped, tag = 'output window, operand 0, single buffered']
    %11 = vsyncpa [#allocation9], 0
    %12 = vsyncpa [#allocation10], 0
    loop: start=0, step=1, limit=5
    $region2: #{tpu_custom_call.1} parent=1 // loop_pre_header
      _
    $region3: #{tpu_custom_call.1} parent=1 // loop_header
      %s14 = sphi 0, %s18
      %p15 = scmp.ge.s32.totalorder %s14, 5
      %s22 = sphi 0, %s22
      %s24 = sphi 0, %s22
      %s25 = sphi 0, %s24
      %s39 = sphi 0, %s25
      %s43 = sphi 0, %s43
      %s45 = sphi 0, %s43
      %s46 = sphi 0, %s45
      %s60 = sphi 0, %s46
    $region4: #{tpu_custom_call.1} parent=1 // loop_header_branch
      %17 = sbr.rel (%p15) target = $region8
    $region5: #{tpu_custom_call.1} parent=1 // loop_body
      %s19 = ssub.s32 %s14, 1
      %s20 = ssub.s32 %s14, 2
      %s21 = sadd.s32 %s14, 1
      %s23 = sadd.s32 %s22, 1
      %p26 = scmp.eq.s32.totalorder %s14, 2
      %p27 = scmp.ne.s32.totalorder %s22, %s24
      %p28 = scmp.eq.s32.totalorder %s14, 0
      %p29 = por %p27, %p28
      %p30 = scmp.ne.s32.totalorder %s22, %s24
      %p31 = scmp.eq.s32.totalorder %s19, 2
      %p32 = por %p30, %p31
      %p33 = scmp.ne.s32.totalorder %s24, %s25
      %p34 = scmp.eq.s32.totalorder %s19, 0
      %p35 = por %p33, %p34
      %p36 = scmp.ne.s32.totalorder %s24, %s25
      %p37 = scmp.eq.s32.totalorder %s20, 2
      %p38 = por %p36, %p37
      %p40 = scmp.ne.s32.totalorder %s25, %s39
      %p41 = scmp.eq.s32.totalorder %s20, 0
      %p42 = por %p40, %p41
      %s44 = sadd.s32 %s43, 1
      %p47 = scmp.eq.s32.totalorder %s14, 2
      %p48 = scmp.ne.s32.totalorder %s43, %s45
      %p49 = scmp.eq.s32.totalorder %s14, 0
      %p50 = por %p48, %p49
      %p51 = scmp.ne.s32.totalorder %s43, %s45
      %p52 = scmp.eq.s32.totalorder %s19, 2
      %p53 = por %p51, %p52
      %p54 = scmp.ne.s32.totalorder %s45, %s46
      %p55 = scmp.eq.s32.totalorder %s19, 0
      %p56 = por %p54, %p55
      %p57 = scmp.ne.s32.totalorder %s45, %s46
      %p58 = scmp.eq.s32.totalorder %s20, 2
      %p59 = por %p57, %p58
      %p61 = scmp.ne.s32.totalorder %s46, %s60
      %p62 = scmp.eq.s32.totalorder %s20, 0
      %p63 = por %p61, %p62
      %p64 = scmp.le.s32.totalorder 1, %s14
      %p65 = scmp.lt.s32.totalorder %s14, 4
      %p66 = pnand %p64, %p65
      %p67 = pneg %p66
      // Predicated region
      $region9: #{tpu_custom_call.1} parent=5 // pred_check
        _
      $region10: #{tpu_custom_call.1} parent=5 // pred_check_branch
        %69 = sbr.rel (%p66) target = $region12
      $region11: #{tpu_custom_call.1} parent=5 // pred_region
        %s70 = ssub.s32 %s14, 1
        // Predicated region
        $region13: #{tpu_custom_call.1} parent=11 // pred_check
          %p71 = pneg %p35
        $region14: #{tpu_custom_call.1} parent=11 // pred_check_branch
          %73 = sbr.rel (%p71) target = $region16
        $region15: #{tpu_custom_call.1} parent=11 // pred_region
          %s75 = ssub.s32 256, 256
          %76 = vsyncadd [#allocation9], %s75
          %s77 = sshll.u32 [#allocation8], 4
          %s78 = int_to_ptr.vmem [resolvable:$true] %s77
          %83 = dma.hbm_to_vmem [thread:$0]  %s1, 256, %s78, [#allocation9], 128, 128, 8
        $region16: #{tpu_custom_call.1} parent=11 // pred_fallthru
          _
      $region12: #{tpu_custom_call.1} parent=5 // pred_fallthru
        _
      %p84 = scmp.lt.s32.totalorder %s14, 3
      // Predicated region
      $region17: #{tpu_custom_call.1} parent=5 // pred_check
        %p85 = pneg %p84
      $region18: #{tpu_custom_call.1} parent=5 // pred_check_branch
        %87 = sbr.rel (%p85) target = $region20
      $region19: #{tpu_custom_call.1} parent=5 // pred_region
        _
      $region20: #{tpu_custom_call.1} parent=5 // pred_fallthru
        _
      %p88 = scmp.le.s32.totalorder 1, %s14
      %p89 = scmp.lt.s32.totalorder %s14, 4
      %p90 = pnand %p88, %p89
      %p91 = pneg %p90
      // Predicated region
      $region21: #{tpu_custom_call.1} parent=5 // pred_check
        _
      $region22: #{tpu_custom_call.1} parent=5 // pred_check_branch
        %93 = sbr.rel (%p90) target = $region24
      $region23: #{tpu_custom_call.1} parent=5 // pred_region
        %s94 = ssub.s32 %s14, 1
        // Predicated region
        $region25: #{tpu_custom_call.1} parent=23 // pred_check
          %p95 = pneg %p35
        $region26: #{tpu_custom_call.1} parent=23 // pred_check_branch
          %97 = sbr.rel (%p95) target = $region28
        $region27: #{tpu_custom_call.1} parent=23 // pred_region
          %98 = dma.done [#allocation9], 256
        $region28: #{tpu_custom_call.1} parent=23 // pred_fallthru
          _
        %p99 = pneg %p35
        %p100 = pneg %p32
        %p101 = pneg %p56
        %p102 = pneg %p53
        %p103 = scmp.eq.s32.totalorder %s19, 0
        // Predicated region
        $region29: #{tpu_custom_call.1} parent=23 // pred_check
          %p104 = pneg %p103
        $region30: #{tpu_custom_call.1} parent=23 // pred_check_branch
          %106 = sbr.rel (%p104) target = $region32
        $region31: #{tpu_custom_call.1} parent=23 // pred_region
          %vm107 = vcmask 0
          %108 = vst.msk [vmem:[#allocation5] sm:$0x1] %vm107, 0.0
        $region32: #{tpu_custom_call.1} parent=23 // pred_fallthru
          _
        %s109 = smul.u32 %s19, 128
        loop: start=0, step=1, limit=128
        $region33: #{tpu_custom_call.1} parent=23 // loop_pre_header
          _
        $region34: #{tpu_custom_call.1} parent=23 // loop_header
          %s111 = sphi 0, %s115
          %p112 = scmp.ge.s32.totalorder %s111, 128
        $region35: #{tpu_custom_call.1} parent=23 // loop_header_branch
          %114 = sbr.rel (%p112) target = $region39
        $region36: #{tpu_custom_call.1} parent=23 // loop_body
          %s116 = sadd.s32 %s109, %s111
          %s117 = smul.u32 %s116, 3
          %s118 = sld [smem:[#allocation7 + %s117]]
          %s119 = sadd.s32 %s117, 1
          %s120 = sld [smem:[#allocation7 + %s119]]
          %s121 = sadd.s32 %s117, 2
          %s122 = sld [smem:[#allocation7 + %s121]]
          %s123 = scalar_lea.vmem [#allocation8], %s118
          %v124 = vld [vmem:[%s123] sm:$0x1]
          %s125 = scalar_lea.vmem [#allocation2], %s111
          %126 = vst [vmem:[%s125] sm:$0x1] %v124
          %s127 = scalar_lea.vmem [#allocation8], %s120
          %v128 = vld [vmem:[%s127] sm:$0x1]
          %s129 = scalar_lea.vmem [#allocation3], %s111
          %130 = vst [vmem:[%s129] sm:$0x1] %v128
          %s131 = scalar_lea.vmem [#allocation8], %s122
          %v132 = vld [vmem:[%s131] sm:$0x1]
          %s133 = scalar_lea.vmem [#allocation4], %s111
          %134 = vst [vmem:[%s133] sm:$0x1] %v132
        $region37: #{tpu_custom_call.1} parent=23 // loop_footer
          %s115 = sadd.s32 1, %s111
        $region38: #{tpu_custom_call.1} parent=23 // loop_footer_branch
          %110 = sbr.rel target = $region34
        $region39: #{tpu_custom_call.1} parent=23 // loop_exit
          _
        %v135 = vld [vmem:[#allocation2] sm:$0xff]
        %v136 = vld [vmem:[#allocation2 + $0x8] sm:$0xff]
        %v137 = vld [vmem:[#allocation2 + $0x10] sm:$0xff]
        %v138 = vld [vmem:[#allocation2 + $0x18] sm:$0xff]
        %v139 = vld [vmem:[#allocation2 + $0x20] sm:$0xff]
        %v140 = vld [vmem:[#allocation2 + $0x28] sm:$0xff]
        %v141 = vld [vmem:[#allocation2 + $0x30] sm:$0xff]
        %v142 = vld [vmem:[#allocation2 + $0x38] sm:$0xff]
        %v143 = vld [vmem:[#allocation2 + $0x40] sm:$0xff]
        %v144 = vld [vmem:[#allocation2 + $0x48] sm:$0xff]
        %v145 = vld [vmem:[#allocation2 + $0x50] sm:$0xff]
        %v146 = vld [vmem:[#allocation2 + $0x58] sm:$0xff]
        %v147 = vld [vmem:[#allocation2 + $0x60] sm:$0xff]
        %v148 = vld [vmem:[#allocation2 + $0x68] sm:$0xff]
        %v149 = vld [vmem:[#allocation2 + $0x70] sm:$0xff]
        %v150 = vld [vmem:[#allocation2 + $0x78] sm:$0xff]
        %v151 = vld [vmem:[#allocation3] sm:$0xff]
        %v152 = vld [vmem:[#allocation3 + $0x8] sm:$0xff]
        %v153 = vld [vmem:[#allocation3 + $0x10] sm:$0xff]
        %v154 = vld [vmem:[#allocation3 + $0x18] sm:$0xff]
        %v155 = vld [vmem:[#allocation3 + $0x20] sm:$0xff]
        %v156 = vld [vmem:[#allocation3 + $0x28] sm:$0xff]
        %v157 = vld [vmem:[#allocation3 + $0x30] sm:$0xff]
        %v158 = vld [vmem:[#allocation3 + $0x38] sm:$0xff]
        %v159 = vld [vmem:[#allocation3 + $0x40] sm:$0xff]
        %v160 = vld [vmem:[#allocation3 + $0x48] sm:$0xff]
        %v161 = vld [vmem:[#allocation3 + $0x50] sm:$0xff]
        %v162 = vld [vmem:[#allocation3 + $0x58] sm:$0xff]
        %v163 = vld [vmem:[#allocation3 + $0x60] sm:$0xff]
        %v164 = vld [vmem:[#allocation3 + $0x68] sm:$0xff]
        %v165 = vld [vmem:[#allocation3 + $0x70] sm:$0xff]
        %v166 = vld [vmem:[#allocation3 + $0x78] sm:$0xff]
        %v167 = vld [vmem:[#allocation4] sm:$0xff]
        %v168 = vld [vmem:[#allocation4 + $0x8] sm:$0xff]
        %v169 = vld [vmem:[#allocation4 + $0x10] sm:$0xff]
        %v170 = vld [vmem:[#allocation4 + $0x18] sm:$0xff]
        %v171 = vld [vmem:[#allocation4 + $0x20] sm:$0xff]
        %v172 = vld [vmem:[#allocation4 + $0x28] sm:$0xff]
        %v173 = vld [vmem:[#allocation4 + $0x30] sm:$0xff]
        %v174 = vld [vmem:[#allocation4 + $0x38] sm:$0xff]
        %v175 = vld [vmem:[#allocation4 + $0x40] sm:$0xff]
        %v176 = vld [vmem:[#allocation4 + $0x48] sm:$0xff]
        %v177 = vld [vmem:[#allocation4 + $0x50] sm:$0xff]
        %v178 = vld [vmem:[#allocation4 + $0x58] sm:$0xff]
        %v179 = vld [vmem:[#allocation4 + $0x60] sm:$0xff]
        %v180 = vld [vmem:[#allocation4 + $0x68] sm:$0xff]
        %v181 = vld [vmem:[#allocation4 + $0x70] sm:$0xff]
        %v182 = vld [vmem:[#allocation4 + $0x78] sm:$0xff]
        %v183 = vsub.f32 %v135, %v151
        %v184 = vsub.f32 %v136, %v152
        %v185 = vsub.f32 %v137, %v153
        %v186 = vsub.f32 %v138, %v154
        %v187 = vsub.f32 %v139, %v155
        %v188 = vsub.f32 %v140, %v156
        %v189 = vsub.f32 %v141, %v157
        %v190 = vsub.f32 %v142, %v158
        %v191 = vsub.f32 %v143, %v159
        %v192 = vsub.f32 %v144, %v160
        %v193 = vsub.f32 %v145, %v161
        %v194 = vsub.f32 %v146, %v162
        %v195 = vsub.f32 %v147, %v163
        %v196 = vsub.f32 %v148, %v164
        %v197 = vsub.f32 %v149, %v165
        %v198 = vsub.f32 %v150, %v166
        %v199 = vmul.f32 %v183, %v183
        %v200 = vmul.f32 %v184, %v184
        %v201 = vmul.f32 %v185, %v185
        %v202 = vmul.f32 %v186, %v186
        %v203 = vmul.f32 %v187, %v187
        %v204 = vmul.f32 %v188, %v188
        %v205 = vmul.f32 %v189, %v189
        %v206 = vmul.f32 %v190, %v190
        %v207 = vmul.f32 %v191, %v191
        %v208 = vmul.f32 %v192, %v192
        %v209 = vmul.f32 %v193, %v193
        %v210 = vmul.f32 %v194, %v194
        %v211 = vmul.f32 %v195, %v195
        %v212 = vmul.f32 %v196, %v196
        %v213 = vmul.f32 %v197, %v197
        %v214 = vmul.f32 %v198, %v198
        %215 = vadd.xlane.f32.xlu0 %v199
        %v216 = vpop.xlane.xlu0 %215
        %217 = vadd.xlane.f32.xlu0 %v200
        %v218 = vpop.xlane.xlu0 %217
        %219 = vadd.xlane.f32.xlu0 %v201
        %v220 = vpop.xlane.xlu0 %219
        %221 = vadd.xlane.f32.xlu0 %v202
        %v222 = vpop.xlane.xlu0 %221
        %223 = vadd.xlane.f32.xlu0 %v203
        %v224 = vpop.xlane.xlu0 %223
        %225 = vadd.xlane.f32.xlu0 %v204
        %v226 = vpop.xlane.xlu0 %225
        %227 = vadd.xlane.f32.xlu0 %v205
        %v228 = vpop.xlane.xlu0 %227
        %229 = vadd.xlane.f32.xlu0 %v206
        %v230 = vpop.xlane.xlu0 %229
        %231 = vadd.xlane.f32.xlu0 %v207
        %v232 = vpop.xlane.xlu0 %231
        %233 = vadd.xlane.f32.xlu0 %v208
        %v234 = vpop.xlane.xlu0 %233
        %235 = vadd.xlane.f32.xlu0 %v209
        %v236 = vpop.xlane.xlu0 %235
        %237 = vadd.xlane.f32.xlu0 %v210
        %v238 = vpop.xlane.xlu0 %237
        %239 = vadd.xlane.f32.xlu0 %v211
        %v240 = vpop.xlane.xlu0 %239
        %241 = vadd.xlane.f32.xlu0 %v212
        %v242 = vpop.xlane.xlu0 %241
        %243 = vadd.xlane.f32.xlu0 %v213
        %v244 = vpop.xlane.xlu0 %243
        %245 = vadd.xlane.f32.xlu0 %v214
        %v246 = vpop.xlane.xlu0 %245
        %v247 = vsub.f32 %v135, %v167
        %v248 = vsub.f32 %v136, %v168
        %v249 = vsub.f32 %v137, %v169
        %v250 = vsub.f32 %v138, %v170
        %v251 = vsub.f32 %v139, %v171
        %v252 = vsub.f32 %v140, %v172
        %v253 = vsub.f32 %v141, %v173
        %v254 = vsub.f32 %v142, %v174
        %v255 = vsub.f32 %v143, %v175
        %v256 = vsub.f32 %v144, %v176
        %v257 = vsub.f32 %v145, %v177
        %v258 = vsub.f32 %v146, %v178
        %v259 = vsub.f32 %v147, %v179
        %v260 = vsub.f32 %v148, %v180
        %v261 = vsub.f32 %v149, %v181
        %v262 = vsub.f32 %v150, %v182
        %v263 = vmul.f32 %v247, %v247
        %v264 = vmul.f32 %v248, %v248
        %v265 = vmul.f32 %v249, %v249
        %v266 = vmul.f32 %v250, %v250
        %v267 = vmul.f32 %v251, %v251
        %v268 = vmul.f32 %v252, %v252
        %v269 = vmul.f32 %v253, %v253
        %v270 = vmul.f32 %v254, %v254
        %v271 = vmul.f32 %v255, %v255
        %v272 = vmul.f32 %v256, %v256
        %v273 = vmul.f32 %v257, %v257
        %v274 = vmul.f32 %v258, %v258
        %v275 = vmul.f32 %v259, %v259
        %v276 = vmul.f32 %v260, %v260
        %v277 = vmul.f32 %v261, %v261
        %v278 = vmul.f32 %v262, %v262
        %279 = vadd.xlane.f32.xlu0 %v263
        %v280 = vpop.xlane.xlu0 %279
        %281 = vadd.xlane.f32.xlu0 %v264
        %v282 = vpop.xlane.xlu0 %281
        %283 = vadd.xlane.f32.xlu0 %v265
        %v284 = vpop.xlane.xlu0 %283
        %285 = vadd.xlane.f32.xlu0 %v266
        %v286 = vpop.xlane.xlu0 %285
        %287 = vadd.xlane.f32.xlu0 %v267
        %v288 = vpop.xlane.xlu0 %287
        %289 = vadd.xlane.f32.xlu0 %v268
        %v290 = vpop.xlane.xlu0 %289
        %291 = vadd.xlane.f32.xlu0 %v269
        %v292 = vpop.xlane.xlu0 %291
        %293 = vadd.xlane.f32.xlu0 %v270
        %v294 = vpop.xlane.xlu0 %293
        %295 = vadd.xlane.f32.xlu0 %v271
        %v296 = vpop.xlane.xlu0 %295
        %297 = vadd.xlane.f32.xlu0 %v272
        %v298 = vpop.xlane.xlu0 %297
        %299 = vadd.xlane.f32.xlu0 %v273
        %v300 = vpop.xlane.xlu0 %299
        %301 = vadd.xlane.f32.xlu0 %v274
        %v302 = vpop.xlane.xlu0 %301
        %303 = vadd.xlane.f32.xlu0 %v275
        %v304 = vpop.xlane.xlu0 %303
        %305 = vadd.xlane.f32.xlu0 %v276
        %v306 = vpop.xlane.xlu0 %305
        %307 = vadd.xlane.f32.xlu0 %v277
        %v308 = vpop.xlane.xlu0 %307
        %309 = vadd.xlane.f32.xlu0 %v278
        %v310 = vpop.xlane.xlu0 %309
        %v311 = vsub.f32 %v216, %v280
        %v312 = vsub.f32 %v218, %v282
        %v313 = vsub.f32 %v220, %v284
        %v314 = vsub.f32 %v222, %v286
        %v315 = vsub.f32 %v224, %v288
        %v316 = vsub.f32 %v226, %v290
        %v317 = vsub.f32 %v228, %v292
        %v318 = vsub.f32 %v230, %v294
        %v319 = vsub.f32 %v232, %v296
        %v320 = vsub.f32 %v234, %v298
        %v321 = vsub.f32 %v236, %v300
        %v322 = vsub.f32 %v238, %v302
        %v323 = vsub.f32 %v240, %v304
        %v324 = vsub.f32 %v242, %v306
        %v325 = vsub.f32 %v244, %v308
        %v326 = vsub.f32 %v246, %v310
        %v327 = vadd.f32 %v311, 1.0
        %v328 = vadd.f32 %v312, 1.0
        %v329 = vadd.f32 %v313, 1.0
        %v330 = vadd.f32 %v314, 1.0
        %v331 = vadd.f32 %v315, 1.0
        %v332 = vadd.f32 %v316, 1.0
        %v333 = vadd.f32 %v317, 1.0
        %v334 = vadd.f32 %v318, 1.0
        %v335 = vadd.f32 %v319, 1.0
        %v336 = vadd.f32 %v320, 1.0
        %v337 = vadd.f32 %v321, 1.0
        %v338 = vadd.f32 %v322, 1.0
        %v339 = vadd.f32 %v323, 1.0
        %v340 = vadd.f32 %v324, 1.0
        %v341 = vadd.f32 %v325, 1.0
        %v342 = vadd.f32 %v326, 1.0
        %v343 = vmax.f32 %v327, 0.0
        %v344 = vmax.f32 %v328, 0.0
        %v345 = vmax.f32 %v329, 0.0
        %v346 = vmax.f32 %v330, 0.0
        %v347 = vmax.f32 %v331, 0.0
        %v348 = vmax.f32 %v332, 0.0
        %v349 = vmax.f32 %v333, 0.0
        %v350 = vmax.f32 %v334, 0.0
        %v351 = vmax.f32 %v335, 0.0
        %v352 = vmax.f32 %v336, 0.0
        %v353 = vmax.f32 %v337, 0.0
        %v354 = vmax.f32 %v338, 0.0
        %v355 = vmax.f32 %v339, 0.0
        %v356 = vmax.f32 %v340, 0.0
        %v357 = vmax.f32 %v341, 0.0
        %v358 = vmax.f32 %v342, 0.0
        %v359 = vlaneseq
        %v360 = vshrl.u32 %v359, 7
        %v361 = vadd.s32 %v360, 8
        %v362 = vadd.s32 %v360, 16
        %v363 = vadd.s32 %v360, 24
        %v364 = vadd.s32 %v360, 32
        %v365 = vadd.s32 %v360, 40
        %v366 = vadd.s32 %v360, 48
        %v367 = vadd.s32 %v360, 56
        %v368 = vadd.s32 %v360, 64
        %v369 = vadd.s32 %v360, 72
        %v370 = vadd.s32 %v360, 80
        %v371 = vadd.s32 %v360, 88
        %v372 = vadd.s32 %v360, 96
        %v373 = vadd.s32 %v360, 104
        %v374 = vadd.s32 %v360, 112
        %v375 = vadd.s32 %v360, 120
        %v376 = vstv %s109
        %v377 = vadd.s32 %v376, %v360
        %v378 = vadd.s32 %v376, %v361
        %v379 = vadd.s32 %v376, %v362
        %v380 = vadd.s32 %v376, %v363
        %v381 = vadd.s32 %v376, %v364
        %v382 = vadd.s32 %v376, %v365
        %v383 = vadd.s32 %v376, %v366
        %v384 = vadd.s32 %v376, %v367
        %v385 = vadd.s32 %v376, %v368
        %v386 = vadd.s32 %v376, %v369
        %v387 = vadd.s32 %v376, %v370
        %v388 = vadd.s32 %v376, %v371
        %v389 = vadd.s32 %v376, %v372
        %v390 = vadd.s32 %v376, %v373
        %v391 = vadd.s32 %v376, %v374
        %v392 = vadd.s32 %v376, %v375
        %vm393 = vcmp.lt.s32.totalorder %v377, 288
        %vm394 = vcmp.lt.s32.totalorder %v378, 288
        %vm395 = vcmp.lt.s32.totalorder %v379, 288
        %vm396 = vcmp.lt.s32.totalorder %v380, 288
        %vm397 = vcmp.lt.s32.totalorder %v381, 288
        %vm398 = vcmp.lt.s32.totalorder %v382, 288
        %vm399 = vcmp.lt.s32.totalorder %v383, 288
        %vm400 = vcmp.lt.s32.totalorder %v384, 288
        %vm401 = vcmp.lt.s32.totalorder %v385, 288
        %vm402 = vcmp.lt.s32.totalorder %v386, 288
        %vm403 = vcmp.lt.s32.totalorder %v387, 288
        %vm404 = vcmp.lt.s32.totalorder %v388, 288
        %vm405 = vcmp.lt.s32.totalorder %v389, 288
        %vm406 = vcmp.lt.s32.totalorder %v390, 288
        %vm407 = vcmp.lt.s32.totalorder %v391, 288
        %vm408 = vcmp.lt.s32.totalorder %v392, 288
        %v409 = vsel %vm393, %v343, 0.0
        %v410 = vsel %vm394, %v344, 0.0
        %v411 = vsel %vm395, %v345, 0.0
        %v412 = vsel %vm396, %v346, 0.0
        %v413 = vsel %vm397, %v347, 0.0
        %v414 = vsel %vm398, %v348, 0.0
        %v415 = vsel %vm399, %v349, 0.0
        %v416 = vsel %vm400, %v350, 0.0
        %v417 = vsel %vm401, %v351, 0.0
        %v418 = vsel %vm402, %v352, 0.0
        %v419 = vsel %vm403, %v353, 0.0
        %v420 = vsel %vm404, %v354, 0.0
        %v421 = vsel %vm405, %v355, 0.0
        %v422 = vsel %vm406, %v356, 0.0
        %v423 = vsel %vm407, %v357, 0.0
        %v424 = vsel %vm408, %v358, 0.0
        %v425 = vld [vmem:[#allocation5] sm:$0x1]
        %vm426 = vcmask 7168
        %v427 = vsel %vm426, %v409, 0.0
        %v428 = vsel %vm426, %v410, 0.0
        %v429 = vadd.f32 %v427, %v428
        %v430 = vsel %vm426, %v411, 0.0
        %v431 = vadd.f32 %v429, %v430
        %v432 = vsel %vm426, %v412, 0.0
        %v433 = vadd.f32 %v431, %v432
        %v434 = vsel %vm426, %v413, 0.0
        %v435 = vadd.f32 %v433, %v434
        %v436 = vsel %vm426, %v414, 0.0
        %v437 = vadd.f32 %v435, %v436
        %v438 = vsel %vm426, %v415, 0.0
        %v439 = vadd.f32 %v437, %v438
        %v440 = vsel %vm426, %v416, 0.0
        %v441 = vadd.f32 %v439, %v440
        %v442 = vsel %vm426, %v417, 0.0
        %v443 = vadd.f32 %v441, %v442
        %v444 = vsel %vm426, %v418, 0.0
        %v445 = vadd.f32 %v443, %v444
        %v446 = vsel %vm426, %v419, 0.0
        %v447 = vadd.f32 %v445, %v446
        %v448 = vsel %vm426, %v420, 0.0
        %v449 = vadd.f32 %v447, %v448
        %v450 = vsel %vm426, %v421, 0.0
        %v451 = vadd.f32 %v449, %v450
        %v452 = vsel %vm426, %v422, 0.0
        %v453 = vadd.f32 %v451, %v452
        %v454 = vsel %vm426, %v423, 0.0
        %v455 = vadd.f32 %v453, %v454
        %v456 = vsel %vm426, %v424, 0.0
        %v457 = vadd.f32 %v455, %v456
        %458 = vadd.xlane.f32.xlu0 %v457
        %v459 = vpop.xlane.xlu0 %458
        %v460 = vrot.slane %v459, 4
        %v461 = vadd.f32 %v459, %v460
        %v462 = vrot.slane %v461, 2
        %v463 = vadd.f32 %v461, %v462
        %v464 = vrot.slane %v463, 1
        %v465 = vadd.f32 %v463, %v464
        %s466 = vtos %v465
        %v467 = vstv %s466
        %v468 = vadd.f32 %v425, %v467
        %vm469 = vcmask 0
        %470 = vst.msk [vmem:[#allocation5] sm:$0x1] %vm469, %v468
        %p471 = scmp.eq.s32.totalorder %s19, 2
        // Predicated region
        $region40: #{tpu_custom_call.1} parent=23 // pred_check
          %p472 = pneg %p471
        $region41: #{tpu_custom_call.1} parent=23 // pred_check_branch
          %474 = sbr.rel (%p472) target = $region43
        $region42: #{tpu_custom_call.1} parent=23 // pred_region
          %v475 = vld [vmem:[#allocation5] sm:$0x1]
          %v476 = vmul.f32 %v475, 0.0034722222
          %477 = vst.msk [vmem:[#allocation11] sm:$0x1] %vm469, %v476
        $region43: #{tpu_custom_call.1} parent=23 // pred_fallthru
          _
        // Predicated region
        $region44: #{tpu_custom_call.1} parent=23 // pred_check
          %p478 = pneg %p53
        $region45: #{tpu_custom_call.1} parent=23 // pred_check_branch
          %480 = sbr.rel (%p478) target = $region47
        $region46: #{tpu_custom_call.1} parent=23 // pred_region
          %s482 = ssub.s32 16, 16
          %483 = vsyncadd [#allocation10], %s482
          %s485 = sshll.u32 [#allocation11], 4
          %s486 = int_to_ptr.vmem [resolvable:$true] %s485
          %488 = dma.vmem_to_hbm [thread:$0]  %s486, 16, %s2, [#allocation10]
        $region47: #{tpu_custom_call.1} parent=23 // pred_fallthru
          _
        // Predicated region
        $region48: #{tpu_custom_call.1} parent=23 // pred_check
          %p489 = pneg %p53
        $region49: #{tpu_custom_call.1} parent=23 // pred_check_branch
          %491 = sbr.rel (%p489) target = $region51
        $region50: #{tpu_custom_call.1} parent=23 // pred_region
          %492 = dma.done [#allocation10], 16
        $region51: #{tpu_custom_call.1} parent=23 // pred_fallthru
          _
      $region24: #{tpu_custom_call.1} parent=5 // pred_fallthru
        _
      %p493 = scmp.le.s32.totalorder 2, %s14
      // Predicated region
      $region52: #{tpu_custom_call.1} parent=5 // pred_check
        %p494 = pneg %p493
      $region53: #{tpu_custom_call.1} parent=5 // pred_check_branch
        %496 = sbr.rel (%p494) target = $region55
      $region54: #{tpu_custom_call.1} parent=5 // pred_region
        %s497 = ssub.s32 %s14, 2
      $region55: #{tpu_custom_call.1} parent=5 // pred_fallthru
        _
    $region6: #{tpu_custom_call.1} parent=1 // loop_footer
      %s18 = sadd.s32 1, %s14
    $region7: #{tpu_custom_call.1} parent=1 // loop_footer_branch
      %13 = sbr.rel target = $region3
    $region8: #{tpu_custom_call.1} parent=1 // loop_exit
      _
    %498 = vsyncpa [#allocation9], 1
    %s499 = scalar_lea.sflag [#allocation9], 1
    %500 = vsyncpa %s499, 1
    %501 = vsyncpa [#allocation10], 1
    %s502 = scalar_lea.sflag [#allocation10], 1
    %503 = vsyncpa %s502, 1

</llo_original>
